<compile_context>
chip_gen: v7x
topology: tpu7x:2x2x1
jax: 0.10.0
libtpu: 0.0.40
codegen_flags: <defaults>
</compile_context>

<pallas_src>
import jax
import jax.numpy as jnp
from jax import lax
from jax.experimental import pallas as pl
from jax.experimental.pallas import tpu as pltpu

LANE = 128
SUBLANE = 8
NEG_BIG = -1e30  # bias for padded softmax lanes; exp underflows to exactly 0


def _round_up(n, m):
    return ((n + m - 1) // m) * m


def attention_block_kernel(x_ref, w1_ref, b1_ref, w2_ref, b2_ref, k_ref):
    i = pl.program_id(0)

    @pl.when(i == 0)
    def _():
        k_ref[...] = jnp.zeros_like(k_ref)

    x = x_ref[...]  # (tb, d_in), f32

    # fc1 / fc2 (weights pre-transposed to (in, out), lane-padded to 128)
    h1 = jnp.dot(x, w1_ref[...], preferred_element_type=jnp.float32) + b1_ref[...]
    h2 = jnp.dot(h1, w2_ref[...], preferred_element_type=jnp.float32) + b2_ref[...]

    # Numerically stable softmax over the lane axis; padded lanes carry a
    # -1e30 bias so they contribute exactly 0.
    h2 = h2 - jnp.max(h2, axis=-1, keepdims=True)
    e = jnp.exp(h2)
    attn = e * pl.reciprocal(jnp.sum(e, axis=-1, keepdims=True), approx=True)

    # K += x^T @ attn as a contraction over the batch axis (no explicit x.T).
    k_ref[...] += lax.dot_general(
        x, attn,
        dimension_numbers=(((0,), (0,)), ((), ())),
        preferred_element_type=jnp.float32,
    )


def attention_block(x, w1, b1, w2, b2, *, batch_tile=128):
    """K = x.T @ softmax(fc2(fc1(x))).  Weights are pre-transposed (in, out)."""
    B, d_in = x.shape
    d_out = w1.shape[1]
    d2 = w2.shape[1]

    # Lane-dense padding of the feature axes.
    d_out_p = _round_up(d_out, LANE)
    d2_p = _round_up(d2, LANE)
    w1p = jnp.pad(w1, ((0, 0), (0, d_out_p - d_out)))
    b1p = jnp.pad(b1, ((0, 0), (0, d_out_p - d_out)))
    w2p = jnp.pad(w2, ((0, d_out_p - d_out), (0, d2_p - d2)))
    b2p = jnp.pad(b2, ((0, 0), (0, d2_p - d2)), constant_values=NEG_BIG)

    # Batch tiling (zero-row padding is exact for the accumulated outer product).
    tb = _round_up(min(batch_tile, _round_up(B, SUBLANE)), SUBLANE)
    Bp = _round_up(B, tb)
    xp = jnp.pad(x, ((0, Bp - B), (0, 0)))
    grid = (Bp // tb,)

    flops = 2 * Bp * (d_in * d_out_p + d_out_p * d2_p + d_in * d2_p)
    bytes_accessed = 4 * (xp.size + w1p.size + b1p.size + w2p.size + b2p.size
                          + d_in * d2_p)

    k_pad = pl.pallas_call(
        attention_block_kernel,
        out_shape=jax.ShapeDtypeStruct((d_in, d2_p), jnp.float32),
        grid_spec=pltpu.PrefetchScalarGridSpec(
            num_scalar_prefetch=0,
            grid=grid,
            in_specs=[
                pl.BlockSpec((tb, d_in), lambda i: (i, 0)),
                pl.BlockSpec((d_in, d_out_p), lambda i: (0, 0)),
                pl.BlockSpec((1, d_out_p), lambda i: (0, 0)),
                pl.BlockSpec((d_out_p, d2_p), lambda i: (0, 0)),
                pl.BlockSpec((1, d2_p), lambda i: (0, 0)),
            ],
            out_specs=pl.BlockSpec((d_in, d2_p), lambda i: (0, 0)),
        ),
        compiler_params=pltpu.CompilerParams(
            dimension_semantics=("arbitrary",),  # reduction axis (accumulator)
        ),
        cost_estimate=pl.CostEstimate(
            flops=flops,
            transcendentals=Bp * d2_p,
            bytes_accessed=bytes_accessed,
        ),
    )(xp, w1p, b1p, w2p, b2p)

    return k_pad[:, :d2]


def init_linear(key, fan_in, fan_out):
    """PyTorch nn.Linear init U(-1/sqrt(fan_in), 1/sqrt(fan_in)); weight returned
    pre-transposed as (fan_in, fan_out)."""
    kw, kb = jax.random.split(key)
    bound = 1.0 / jnp.sqrt(float(fan_in))
    w = jax.random.uniform(kw, (fan_in, fan_out), jnp.float32, -bound, bound)
    b = jax.random.uniform(kb, (1, fan_out), jnp.float32, -bound, bound)
    return w, b


def reference(x, w1, b1, w2, b2):
    h1 = x @ w1 + b1
    h2 = h1 @ w2 + b2
    attn = jax.nn.softmax(h2, axis=-1)
    return x.T @ attn


if __name__ == "__main__":
    input_dim = 32   # features of x
    output_dim = 16  # fc1 out; fc2 out = 32
    batch = 32       # small, but exercises the gridded accumulation (4 tiles of 8)

    key = jax.random.PRNGKey(0)
    kx, k1, k2, k3 = jax.random.split(key, 4)

    x = jax.random.normal(kx, (batch, input_dim), jnp.float32)
    w1, b1 = init_linear(k1, input_dim, output_dim)
    w2, b2 = init_linear(k2, output_dim, output_dim * 2)
    # fc3 is defined in the module but unused in forward(); created for fidelity only.
    w3, b3 = init_linear(k3, output_dim * 2, input_dim)

    K = attention_block(x, w1, b1, w2, b2, batch_tile=8)
    jax.block_until_ready(K)

    K_ref = reference(x, w1, b1, w2, b2)
    assert K.shape == (input_dim, output_dim * 2)
    # Tolerance loosened slightly for pl.reciprocal(approx=True) in the softmax.
    assert jnp.allclose(K, K_ref, atol=1e-2, rtol=1e-2)

    print("KERNEL_OK")
</pallas_src>

<mosaic_0001>
module attributes {stable_mosaic.version = 11 : i64} {
  func.func @attention_block_kernel(%arg0: i32, %arg1: memref<8x32xf32, #tpu.memory_space<vmem>>, %arg2: memref<32x128xf32, #tpu.memory_space<vmem>>, %arg3: memref<1x128xf32, #tpu.memory_space<vmem>>, %arg4: memref<128x128xf32, #tpu.memory_space<vmem>>, %arg5: memref<1x128xf32, #tpu.memory_space<vmem>>, %arg6: memref<32x128xf32, #tpu.memory_space<vmem>>) attributes {dimension_semantics = [#tpu.dimension_semantics<arbitrary>], iteration_bounds = array<i64: 4>, scalar_prefetch = 0 : i64, scratch_operands = 0 : i64, tpu.core_type = #tpu.core_type<tc>, window_params = [{transform_indices = @transform_0, window_bounds = array<i64: 8, 32>}, {pipeline_mode = #tpu.pipeline_mode<synchronous>, transform_indices = @transform_1, window_bounds = array<i64: 32, 128>}, {pipeline_mode = #tpu.pipeline_mode<synchronous>, transform_indices = @transform_2, window_bounds = array<i64: 1, 128>}, {pipeline_mode = #tpu.pipeline_mode<synchronous>, transform_indices = @transform_3, window_bounds = array<i64: 128, 128>}, {pipeline_mode = #tpu.pipeline_mode<synchronous>, transform_indices = @transform_4, window_bounds = array<i64: 1, 128>}, {pipeline_mode = #tpu.pipeline_mode<synchronous>, transform_indices = @transform_5, window_bounds = array<i64: 32, 128>}]} {
    %c0_i32 = arith.constant 0 : i32
    %0 = arith.cmpi eq, %arg0, %c0_i32 : i32
    %1 = arith.extui %0 : i1 to i32
    %c0_i32_0 = arith.constant 0 : i32
    %2 = arith.cmpi ne, %1, %c0_i32_0 : i32
    scf.if %2 {
      %cst_18 = arith.constant 0.000000e+00 : f32
      %28 = vector.broadcast %cst_18 : f32 to vector<32x128xf32>
      %c0_19 = arith.constant 0 : index
      %c0_20 = arith.constant 0 : index
      %29 = vector.load %arg6[%c0_19, %c0_20] : memref<32x128xf32, #tpu.memory_space<vmem>>, vector<32x128xf32>
      tpu.vector_store %arg6[%c0_19, %c0_20], %28 {strides = array<i32>} : memref<32x128xf32, #tpu.memory_space<vmem>>, vector<32x128xf32>,
    } else {
    }
    %c0 = arith.constant 0 : index
    %c0_1 = arith.constant 0 : index
    %3 = vector.load %arg1[%c0, %c0_1] : memref<8x32xf32, #tpu.memory_space<vmem>>, vector<8x32xf32>
    %c0_2 = arith.constant 0 : index
    %c0_3 = arith.constant 0 : index
    %4 = vector.load %arg2[%c0_2, %c0_3] : memref<32x128xf32, #tpu.memory_space<vmem>>, vector<32x128xf32>
    %cst = arith.constant dense<0.000000e+00> : vector<8x128xf32>
    %5 = tpu.matmul %3, %4, %cst {dimension_numbers = #tpu.dot_dimension_numbers<[1], [0], [0], [1], [0, 0, 1, 1], [], []>} : vector<8x32xf32>, vector<32x128xf32>, vector<8x128xf32> -> vector<8x128xf32>
    %c0_4 = arith.constant 0 : index
    %c0_5 = arith.constant 0 : index
    %6 = vector.load %arg3[%c0_4, %c0_5] : memref<1x128xf32, #tpu.memory_space<vmem>>, vector<1x128xf32>
    %7 = vector.broadcast %6 : vector<1x128xf32> to vector<8x128xf32>
    %8 = arith.addf %5, %7 : vector<8x128xf32>
    %c0_6 = arith.constant 0 : index
    %c0_7 = arith.constant 0 : index
    %9 = vector.load %arg4[%c0_6, %c0_7] : memref<128x128xf32, #tpu.memory_space<vmem>>, vector<128x128xf32>
    %cst_8 = arith.constant dense<0.000000e+00> : vector<8x128xf32>
    %10 = tpu.matmul %8, %9, %cst_8 {dimension_numbers = #tpu.dot_dimension_numbers<[1], [0], [0], [1], [0, 0, 1, 1], [], []>} : vector<8x128xf32>, vector<128x128xf32>, vector<8x128xf32> -> vector<8x128xf32>
    %c0_9 = arith.constant 0 : index
    %c0_10 = arith.constant 0 : index
    %11 = vector.load %arg5[%c0_9, %c0_10] : memref<1x128xf32, #tpu.memory_space<vmem>>, vector<1x128xf32>
    %12 = vector.broadcast %11 : vector<1x128xf32> to vector<8x128xf32>
    %13 = arith.addf %10, %12 : vector<8x128xf32>
    %cst_11 = arith.constant dense<0xFF800000> : vector<8xf32>
    %14 = vector.multi_reduction <maximumf>, %13, %cst_11 [1] : vector<8x128xf32> to vector<8xf32>
    %15 = vector.shape_cast %14 : vector<8xf32> to vector<8x1xf32>
    %16 = vector.broadcast %15 : vector<8x1xf32> to vector<8x128xf32>
    %17 = arith.subf %13, %16 : vector<8x128xf32>
    %18 = math.exp %17 : vector<8x128xf32>
    %cst_12 = arith.constant dense<0.000000e+00> : vector<8xf32>
    %19 = vector.multi_reduction <add>, %18, %cst_12 [1] : vector<8x128xf32> to vector<8xf32>
    %20 = vector.shape_cast %19 : vector<8xf32> to vector<8x1xf32>
    %21 = tpu.reciprocal %20 {approx = true} : vector<8x1xf32> -> vector<8x1xf32>
    %22 = vector.broadcast %21 : vector<8x1xf32> to vector<8x128xf32>
    %23 = arith.mulf %18, %22 : vector<8x128xf32>
    %c0_13 = arith.constant 0 : index
    %c0_14 = arith.constant 0 : index
    %24 = vector.load %arg6[%c0_13, %c0_14] : memref<32x128xf32, #tpu.memory_space<vmem>>, vector<32x128xf32>
    %cst_15 = arith.constant dense<0.000000e+00> : vector<32x128xf32>
    %25 = tpu.matmul %3, %23, %cst_15 {dimension_numbers = #tpu.dot_dimension_numbers<[0], [0], [1], [1], [0, 1, 1, 1], [], []>} : vector<8x32xf32>, vector<8x128xf32>, vector<32x128xf32> -> vector<32x128xf32>
    %26 = arith.addf %24, %25 : vector<32x128xf32>
    %c0_16 = arith.constant 0 : index
    %c0_17 = arith.constant 0 : index
    %27 = vector.load %arg6[%c0_16, %c0_17] : memref<32x128xf32, #tpu.memory_space<vmem>>, vector<32x128xf32>
    tpu.vector_store %arg6[%c0_16, %c0_17], %26 {strides = array<i32>} : memref<32x128xf32, #tpu.memory_space<vmem>>, vector<32x128xf32>,
    return
  }
  func.func @transform_0(%arg0: i32) -> (i32, i32) {
    %c0_i32 = arith.constant 0 : i32
    %c0_i32_0 = arith.constant 0 : i32
    return %arg0, %c0_i32 : i32, i32
  }
  func.func @transform_1(%arg0: i32) -> (i32, i32) {
    %c0_i32 = arith.constant 0 : i32
    %c0_i32_0 = arith.constant 0 : i32
    %c0_i32_1 = arith.constant 0 : i32
    return %c0_i32, %c0_i32_0 : i32, i32
  }
  func.func @transform_2(%arg0: i32) -> (i32, i32) {
    %c0_i32 = arith.constant 0 : i32
    %c0_i32_0 = arith.constant 0 : i32
    %c0_i32_1 = arith.constant 0 : i32
    return %c0_i32, %c0_i32_0 : i32, i32
  }
  func.func @transform_3(%arg0: i32) -> (i32, i32) {
    %c0_i32 = arith.constant 0 : i32
    %c0_i32_0 = arith.constant 0 : i32
    %c0_i32_1 = arith.constant 0 : i32
    return %c0_i32, %c0_i32_0 : i32, i32
  }
  func.func @transform_4(%arg0: i32) -> (i32, i32) {
    %c0_i32 = arith.constant 0 : i32
    %c0_i32_0 = arith.constant 0 : i32
    %c0_i32_1 = arith.constant 0 : i32
    return %c0_i32, %c0_i32_0 : i32, i32
  }
  func.func @transform_5(%arg0: i32) -> (i32, i32) {
    %c0_i32 = arith.constant 0 : i32
    %c0_i32_0 = arith.constant 0 : i32
    %c0_i32_1 = arith.constant 0 : i32
    return %c0_i32, %c0_i32_0 : i32, i32
  }
}

</mosaic_0001>

<llo_original>
// kernel: tpu_custom_call.1
$region0: #{tpu_custom_call.1}
  #allocation0 [shape = 'u32[]', space=smem, size = 0x4, offset = 0x4, fixed_abs, tag = 'smem constant byte address 0x4 - core index']
  #allocation1 [shape = 'u32[144,128]{1,0:T(1,128)}', space=vmem, size = 0x12000, scoped, tag = 'internal scratch']
  %s0 = inlined_call_operand.hbm [shape: f32[32,32], index: 0, kind: input, shape index: {}]
  %s1 = inlined_call_operand.hbm [shape: f32[32,128], index: 1, kind: input, shape index: {}]
  %s2 = inlined_call_operand.vmem [shape: f32[1,128], index: 2, kind: input, shape index: {}]
  %s3 = inlined_call_operand.hbm [shape: f32[128,128], index: 3, kind: input, shape index: {}]
  %s4 = inlined_call_operand.vmem [shape: f32[1,128], index: 4, kind: input, shape index: {}]
  %s5 = inlined_call_operand.hbm [shape: f32[32,128], index: 5, kind: output, shape index: {}]
  %s6 = sld [smem:[#allocation0]]
  $region69: #{tpu_custom_call.1} parent=0
    _
  %s8 = ssub.s32 1, %s6
  %s9 = scalar_select 0, %s8, %s6
  $region1: #{tpu_custom_call.1} parent=0
    #allocation2 [shape = 'u8[8192]{0}', space=vmem, size = 0x2000, scoped, tag = 'input window, operand 0']
    #allocation3 [shape = 's32[2]{0}', space=sflag, size = 0x8, scoped, tag = 'scoped memory for tpu_custom_call.1']
    #allocation4 [shape = 's32[2]{0}', space=sflag, size = 0x8, scoped, tag = 'scoped memory for tpu_custom_call.1']
    #allocation5 [shape = 'u8[16384]{0}', space=vmem, size = 0x4000, scoped, tag = 'input window, operand 1, single buffered']
    #allocation6 [shape = 's32[1]{0}', space=sflag, size = 0x4, scoped, tag = 'scoped memory for tpu_custom_call.1']
    #allocation7 [shape = 'u8[65536]{0}', space=vmem, size = 0x10000, scoped, tag = 'input window, operand 3, single buffered']
    #allocation8 [shape = 'u8[16384]{0}', space=vmem, size = 0x4000, scoped, tag = 'output window, operand 0, single buffered']
    %10 = vsyncpa [#allocation3], 0
    %s11 = scalar_lea.sflag [#allocation3], 1
    %12 = vsyncpa %s11, 0
    %13 = vsyncpa [#allocation6], 0
    %14 = vsyncpa [#allocation4], 0
    loop: start=0, step=1, limit=6
    $region2: #{tpu_custom_call.1} parent=1 // loop_pre_header
      _
    $region3: #{tpu_custom_call.1} parent=1 // loop_header
      %s16 = sphi 0, %s20
      %p17 = scmp.ge.s32.totalorder %s16, 6
      %s26 = sphi 0, %s28
      %s29 = sphi 0, %s26
      %s30 = sphi 0, %s29
      %s46 = sphi 0, %s30
      %s50 = sphi 0, %s50
      %s52 = sphi 0, %s50
      %s53 = sphi 0, %s52
      %s67 = sphi 0, %s53
      %s71 = sphi 0, %s71
      %s73 = sphi 0, %s71
      %s74 = sphi 0, %s73
      %s88 = sphi 0, %s74
      %s92 = sphi 0, %s92
      %s94 = sphi 0, %s92
      %s95 = sphi 0, %s94
      %s109 = sphi 0, %s95
      %s113 = sphi 0, %s113
      %s115 = sphi 0, %s113
      %s116 = sphi 0, %s115
      %s130 = sphi 0, %s116
      %s134 = sphi 0, %s134
      %s136 = sphi 0, %s134
      %s137 = sphi 0, %s136
      %s151 = sphi 0, %s137
    $region4: #{tpu_custom_call.1} parent=1 // loop_header_branch
      %19 = sbr.rel (%p17) target = $region8
    $region5: #{tpu_custom_call.1} parent=1 // loop_body
      %s21 = ssub.s32 %s16, 1
      %s22 = ssub.s32 %s16, 2
      %s23 = sadd.s32 %s16, 1
      %s24 = ssub.s32 %s16, %s23
      %p25 = scmp.eq.s32.totalorder %s24, 0
      %s27 = sadd.s32 %s26, 1
      %s28 = scalar_select %p25, %s26, %s27
      %p31 = pneg %p25
      %p32 = scmp.eq.s32.totalorder %s16, 3
      %p33 = por %p31, %p32
      %p34 = scmp.ne.s32.totalorder %s26, %s29
      %p35 = scmp.eq.s32.totalorder %s16, 0
      %p36 = por %p34, %p35
      %p37 = scmp.ne.s32.totalorder %s26, %s29
      %p38 = scmp.eq.s32.totalorder %s21, 3
      %p39 = por %p37, %p38
      %p40 = scmp.ne.s32.totalorder %s29, %s30
      %p41 = scmp.eq.s32.totalorder %s21, 0
      %p42 = por %p40, %p41
      %p43 = scmp.ne.s32.totalorder %s29, %s30
      %p44 = scmp.eq.s32.totalorder %s22, 3
      %p45 = por %p43, %p44
      %p47 = scmp.ne.s32.totalorder %s30, %s46
      %p48 = scmp.eq.s32.totalorder %s22, 0
      %p49 = por %p47, %p48
      %s51 = sadd.s32 %s50, 1
      %p54 = scmp.eq.s32.totalorder %s16, 3
      %p55 = scmp.ne.s32.totalorder %s50, %s52
      %p56 = scmp.eq.s32.totalorder %s16, 0
      %p57 = por %p55, %p56
      %p58 = scmp.ne.s32.totalorder %s50, %s52
      %p59 = scmp.eq.s32.totalorder %s21, 3
      %p60 = por %p58, %p59
      %p61 = scmp.ne.s32.totalorder %s52, %s53
      %p62 = scmp.eq.s32.totalorder %s21, 0
      %p63 = por %p61, %p62
      %p64 = scmp.ne.s32.totalorder %s52, %s53
      %p65 = scmp.eq.s32.totalorder %s22, 3
      %p66 = por %p64, %p65
      %p68 = scmp.ne.s32.totalorder %s53, %s67
      %p69 = scmp.eq.s32.totalorder %s22, 0
      %p70 = por %p68, %p69
      %s72 = sadd.s32 %s71, 1
      %p75 = scmp.eq.s32.totalorder %s16, 3
      %p76 = scmp.ne.s32.totalorder %s71, %s73
      %p77 = scmp.eq.s32.totalorder %s16, 0
      %p78 = por %p76, %p77
      %p79 = scmp.ne.s32.totalorder %s71, %s73
      %p80 = scmp.eq.s32.totalorder %s21, 3
      %p81 = por %p79, %p80
      %p82 = scmp.ne.s32.totalorder %s73, %s74
      %p83 = scmp.eq.s32.totalorder %s21, 0
      %p84 = por %p82, %p83
      %p85 = scmp.ne.s32.totalorder %s73, %s74
      %p86 = scmp.eq.s32.totalorder %s22, 3
      %p87 = por %p85, %p86
      %p89 = scmp.ne.s32.totalorder %s74, %s88
      %p90 = scmp.eq.s32.totalorder %s22, 0
      %p91 = por %p89, %p90
      %s93 = sadd.s32 %s92, 1
      %p96 = scmp.eq.s32.totalorder %s16, 3
      %p97 = scmp.ne.s32.totalorder %s92, %s94
      %p98 = scmp.eq.s32.totalorder %s16, 0
      %p99 = por %p97, %p98
      %p100 = scmp.ne.s32.totalorder %s92, %s94
      %p101 = scmp.eq.s32.totalorder %s21, 3
      %p102 = por %p100, %p101
      %p103 = scmp.ne.s32.totalorder %s94, %s95
      %p104 = scmp.eq.s32.totalorder %s21, 0
      %p105 = por %p103, %p104
      %p106 = scmp.ne.s32.totalorder %s94, %s95
      %p107 = scmp.eq.s32.totalorder %s22, 3
      %p108 = por %p106, %p107
      %p110 = scmp.ne.s32.totalorder %s95, %s109
      %p111 = scmp.eq.s32.totalorder %s22, 0
      %p112 = por %p110, %p111
      %s114 = sadd.s32 %s113, 1
      %p117 = scmp.eq.s32.totalorder %s16, 3
      %p118 = scmp.ne.s32.totalorder %s113, %s115
      %p119 = scmp.eq.s32.totalorder %s16, 0
      %p120 = por %p118, %p119
      %p121 = scmp.ne.s32.totalorder %s113, %s115
      %p122 = scmp.eq.s32.totalorder %s21, 3
      %p123 = por %p121, %p122
      %p124 = scmp.ne.s32.totalorder %s115, %s116
      %p125 = scmp.eq.s32.totalorder %s21, 0
      %p126 = por %p124, %p125
      %p127 = scmp.ne.s32.totalorder %s115, %s116
      %p128 = scmp.eq.s32.totalorder %s22, 3
      %p129 = por %p127, %p128
      %p131 = scmp.ne.s32.totalorder %s116, %s130
      %p132 = scmp.eq.s32.totalorder %s22, 0
      %p133 = por %p131, %p132
      %s135 = sadd.s32 %s134, 1
      %p138 = scmp.eq.s32.totalorder %s16, 3
      %p139 = scmp.ne.s32.totalorder %s134, %s136
      %p140 = scmp.eq.s32.totalorder %s16, 0
      %p141 = por %p139, %p140
      %p142 = scmp.ne.s32.totalorder %s134, %s136
      %p143 = scmp.eq.s32.totalorder %s21, 3
      %p144 = por %p142, %p143
      %p145 = scmp.ne.s32.totalorder %s136, %s137
      %p146 = scmp.eq.s32.totalorder %s21, 0
      %p147 = por %p145, %p146
      %p148 = scmp.ne.s32.totalorder %s136, %s137
      %p149 = scmp.eq.s32.totalorder %s22, 3
      %p150 = por %p148, %p149
      %p152 = scmp.ne.s32.totalorder %s137, %s151
      %p153 = scmp.eq.s32.totalorder %s22, 0
      %p154 = por %p152, %p153
      %p155 = scmp.le.s32.totalorder 1, %s16
      %p156 = scmp.lt.s32.totalorder %s16, 5
      %p157 = pnand %p155, %p156
      %p158 = pneg %p157
      // Predicated region
      $region9: #{tpu_custom_call.1} parent=5 // pred_check
        _
      $region10: #{tpu_custom_call.1} parent=5 // pred_check_branch
        %160 = sbr.rel (%p157) target = $region12
      $region11: #{tpu_custom_call.1} parent=5 // pred_region
        %s161 = ssub.s32 %s16, 1
        // Predicated region
        $region13: #{tpu_custom_call.1} parent=11 // pred_check
          %p162 = pneg %p63
        $region14: #{tpu_custom_call.1} parent=11 // pred_check_branch
          %164 = sbr.rel (%p162) target = $region16
        $region15: #{tpu_custom_call.1} parent=11 // pred_region
          %s166 = ssub.s32 512, 512
          %167 = vsyncadd [#allocation6], %s166
          %s168 = sshll.u32 [#allocation5], 4
          %s169 = int_to_ptr.vmem [resolvable:$true] %s168
          %174 = dma.hbm_to_vmem [thread:$0]  %s1, 512, %s169, [#allocation6], 128, 128, 8
        $region16: #{tpu_custom_call.1} parent=11 // pred_fallthru
          _
        // Predicated region
        $region17: #{tpu_custom_call.1} parent=11 // pred_check
          %p175 = pneg %p84
        $region18: #{tpu_custom_call.1} parent=11 // pred_check_branch
          %177 = sbr.rel (%p175) target = $region20
        $region19: #{tpu_custom_call.1} parent=11 // pred_region
          _
        $region20: #{tpu_custom_call.1} parent=11 // pred_fallthru
          _
        // Predicated region
        $region21: #{tpu_custom_call.1} parent=11 // pred_check
          %p178 = pneg %p105
        $region22: #{tpu_custom_call.1} parent=11 // pred_check_branch
          %180 = sbr.rel (%p178) target = $region24
        $region23: #{tpu_custom_call.1} parent=11 // pred_region
          %s182 = ssub.s32 2048, 2048
          %183 = vsyncadd [#allocation6], %s182
          %s184 = sshll.u32 [#allocation7], 4
          %s185 = int_to_ptr.vmem [resolvable:$true] %s184
          %190 = dma.hbm_to_vmem [thread:$0]  %s3, 2048, %s185, [#allocation6], 128, 128, 8
        $region24: #{tpu_custom_call.1} parent=11 // pred_fallthru
          _
        // Predicated region
        $region25: #{tpu_custom_call.1} parent=11 // pred_check
          %p191 = pneg %p126
        $region26: #{tpu_custom_call.1} parent=11 // pred_check_branch
          %193 = sbr.rel (%p191) target = $region28
        $region27: #{tpu_custom_call.1} parent=11 // pred_region
          _
        $region28: #{tpu_custom_call.1} parent=11 // pred_fallthru
          _
      $region12: #{tpu_custom_call.1} parent=5 // pred_fallthru
        _
      %p194 = scmp.lt.s32.totalorder %s16, 4
      // Predicated region
      $region29: #{tpu_custom_call.1} parent=5 // pred_check
        %p195 = pneg %p194
      $region30: #{tpu_custom_call.1} parent=5 // pred_check_branch
        %197 = sbr.rel (%p195) target = $region32
      $region31: #{tpu_custom_call.1} parent=5 // pred_region
        // Predicated region
        $region33: #{tpu_custom_call.1} parent=31 // pred_check
          %p198 = pneg %p36
        $region34: #{tpu_custom_call.1} parent=31 // pred_check_branch
          %200 = sbr.rel (%p198) target = $region36
        $region35: #{tpu_custom_call.1} parent=31 // pred_region
          %s201 = sand.u32 %s26, 1
          %s202 = scalar_lea.sflag [#allocation3], %s201
          %s203 = sand.u32 %s26, 1
          %s204 = smul.addr %s203, 8
          %s205 = scalar_lea.vmem [#allocation2], %s204
          %s207 = ssub.s32 128, 128
          %208 = vsyncadd %s202, %s207
          %s209 = smul.addr %s16, 128
          %s210 = scalar_lea.hbm %s0, %s209
          %s212 = sshll.u32 %s205, 4
          %s213 = int_to_ptr.vmem [resolvable:$true] %s212
          %215 = dma.hbm_to_vmem [thread:$0]  %s210, 128, %s213, %s202
        $region36: #{tpu_custom_call.1} parent=31 // pred_fallthru
          _
      $region32: #{tpu_custom_call.1} parent=5 // pred_fallthru
        _
      %p216 = scmp.le.s32.totalorder 1, %s16
      %p217 = scmp.lt.s32.totalorder %s16, 5
      %p218 = pnand %p216, %p217
      %p219 = pneg %p218
      // Predicated region
      $region37: #{tpu_custom_call.1} parent=5 // pred_check
        _
      $region38: #{tpu_custom_call.1} parent=5 // pred_check_branch
        %221 = sbr.rel (%p218) target = $region40
      $region39: #{tpu_custom_call.1} parent=5 // pred_region
        %s222 = ssub.s32 %s16, 1
        %s223 = sand.u32 %s29, 1
        %s224 = scalar_lea.sflag [#allocation3], %s223
        %s225 = sand.u32 %s29, 1
        %s226 = smul.addr %s225, 8
        %s227 = scalar_lea.vmem [#allocation2], %s226
        // Predicated region
        $region41: #{tpu_custom_call.1} parent=39 // pred_check
          %p228 = pneg %p42
        $region42: #{tpu_custom_call.1} parent=39 // pred_check_branch
          %230 = sbr.rel (%p228) target = $region44
        $region43: #{tpu_custom_call.1} parent=39 // pred_region
          %231 = dma.done %s224, 128
        $region44: #{tpu_custom_call.1} parent=39 // pred_fallthru
          _
        // Predicated region
        $region45: #{tpu_custom_call.1} parent=39 // pred_check
          %p232 = pneg %p63
        $region46: #{tpu_custom_call.1} parent=39 // pred_check_branch
          %234 = sbr.rel (%p232) target = $region48
        $region47: #{tpu_custom_call.1} parent=39 // pred_region
          %235 = dma.done [#allocation6], 512
        $region48: #{tpu_custom_call.1} parent=39 // pred_fallthru
          _
        // Predicated region
        $region49: #{tpu_custom_call.1} parent=39 // pred_check
          %p236 = pneg %p105
        $region50: #{tpu_custom_call.1} parent=39 // pred_check_branch
          %238 = sbr.rel (%p236) target = $region52
        $region51: #{tpu_custom_call.1} parent=39 // pred_region
          %239 = dma.done [#allocation6], 2048
        $region52: #{tpu_custom_call.1} parent=39 // pred_fallthru
          _
        %s240 = sand.u32 %s29, 1
        %s241 = scalar_lea.sflag [#allocation3], %s240
        %s242 = sand.u32 %s29, 1
        %s243 = smul.addr %s242, 8
        %s244 = scalar_lea.vmem [#allocation2], %s243
        %p245 = pneg %p42
        %p246 = pneg %p39
        %p247 = pneg %p63
        %p248 = pneg %p60
        %p249 = pneg %p84
        %p250 = pneg %p81
        %p251 = pneg %p105
        %p252 = pneg %p102
        %p253 = pneg %p126
        %p254 = pneg %p123
        %p255 = pneg %p147
        %p256 = pneg %p144
        %p257 = scmp.eq.s32.totalorder %s21, 0
        // Predicated region
        $region53: #{tpu_custom_call.1} parent=39 // pred_check
          %p258 = pneg %p257
        $region54: #{tpu_custom_call.1} parent=39 // pred_check_branch
          %260 = sbr.rel (%p258) target = $region56
        $region55: #{tpu_custom_call.1} parent=39 // pred_region
          %261 = vst [vmem:[#allocation8] sm:$0xff] 0.0
          %262 = vst [vmem:[#allocation8 + $0x8] sm:$0xff] 0.0
          %263 = vst [vmem:[#allocation8 + $0x10] sm:$0xff] 0.0
          %264 = vst [vmem:[#allocation8 + $0x18] sm:$0xff] 0.0
        $region56: #{tpu_custom_call.1} parent=39 // pred_fallthru
          _
        %v265 = vld [vmem:[%s227] sm:$0xff]
        %v266 = vld [vmem:[#allocation5] sm:$0xff]
        %v267 = vld [vmem:[#allocation5 + $0x8] sm:$0xff]
        %v268 = vld [vmem:[#allocation5 + $0x10] sm:$0xff]
        %v269 = vld [vmem:[#allocation5 + $0x18] sm:$0xff]
        %v270 = vld [vmem:[%s2] sm:$0x1]
        %v272 = vlaneseq
        %v273 = vshrl.u32 %v272, 7
        %v274 = vsub.s32 0, %v273
        %v275 = vrot.slane %v270, %v274
        %vm277 = vcmask 261120
        %v279 = vsel %vm277, %v265, 0
        %281 = vmatprep.subr.mxu0 0.0
        %282 = vmatpush1.msra.mxu0 %v266
        %283 = vmatprep.subr.mxu0 0.0
        %284 = vmatpush1.msra.mxu0 %v267
        %285 = vmatprep.subr.mxu0 0.0
        %286 = vmatpush1.msra.mxu0 %v268
        %287 = vmatprep.subr.mxu0 0.0
        %288 = vmatpush1.msra.mxu0 %v269
        %289 = vmatprep.subr.mxu0 0.0
        %290 = vmatpush1.msra.mxu0 0.0
        %291 = vmatprep.subr.mxu0 0.0
        %292 = vmatpush1.msra.mxu0 0.0
        %293 = vmatprep.subr.mxu0 0.0
        %294 = vmatpush1.msra.mxu0 0.0
        %295 = vmatprep.subr.mxu0 0.0
        %296 = vmatpush1.msra.mxu0 0.0
        %297 = vmatprep.subr.mxu0 0.0
        %298 = vmatpush1.msra.mxu0 0.0
        %299 = vmatprep.subr.mxu0 0.0
        %300 = vmatpush1.msra.mxu0 0.0
        %301 = vmatprep.subr.mxu0 0.0
        %302 = vmatpush1.msra.mxu0 0.0
        %303 = vmatprep.subr.mxu0 0.0
        %304 = vmatpush1.msra.mxu0 0.0
        %305 = vmatprep.subr.mxu0 0.0
        %306 = vmatpush1.msra.mxu0 0.0
        %307 = vmatprep.subr.mxu0 0.0
        %308 = vmatpush1.msra.mxu0 0.0
        %309 = vmatprep.subr.mxu0 0.0
        %310 = vmatpush1.msra.mxu0 0.0
        %311 = vmatprep.subr.mxu0 0.0
        %312 = vmatpush1.msra.mxu0 0.0
        %313 = vmatprep.subr.mxu0 0.0
        %314 = vmatpush1.msra.mxu0 0.0
        %315 = vmatprep.subr.mxu0 0.0
        %316 = vmatpush1.msra.mxu0 0.0
        %317 = vmatprep.subr.mxu0 0.0
        %318 = vmatpush1.msra.mxu0 0.0
        %319 = vmatprep.subr.mxu0 0.0
        %320 = vmatpush1.msra.mxu0 0.0
        %321 = vmatprep.subr.mxu0 0.0
        %322 = vmatpush1.msra.mxu0 0.0
        %323 = vmatprep.subr.mxu0 0.0
        %324 = vmatpush1.msra.mxu0 0.0
        %325 = vmatprep.subr.mxu0 0.0
        %326 = vmatpush1.msra.mxu0 0.0
        %327 = vmatprep.subr.mxu0 0.0
        %328 = vmatpush1.msra.mxu0 0.0
        %329 = vmatprep.subr.mxu0 0.0
        %330 = vmatpush1.msra.mxu0 0.0
        %331 = vmatprep.subr.mxu0 0.0
        %332 = vmatpush1.msra.mxu0 0.0
        %333 = vmatprep.subr.mxu0 0.0
        %334 = vmatpush1.msra.mxu0 0.0
        %335 = vmatprep.subr.mxu0 0.0
        %336 = vmatpush1.msra.mxu0 0.0
        %337 = vmatprep.subr.mxu0 0.0
        %338 = vmatpush1.msra.mxu0 0.0
        %339 = vmatprep.subr.mxu0 0.0
        %340 = vmatpush1.msra.mxu0 0.0
        %341 = vmatprep.subr.mxu0 0.0
        %342 = vmatpush1.msra.mxu0 0.0
        %343 = vmatprep.subr.mxu0 0.0
        %344 = vmatpush1.msra.mxu0 0.0
        %345 = vmatprep.mubr.f32.mxu0 0.0
        %346 = vmatmul.mubr.f32.gmra.mrb[0].mxu0 %v279
        %v347 = vpop.f32.mrb[0].mxu0
        %v348 = vadd.f32 %v275, %v347
        %v349 = vpop.f32.mrb[0].mxu0
        %350 = vdwg.mxu0
        %v351 = vld [vmem:[#allocation7] sm:$0xff]
        %v352 = vld [vmem:[#allocation7 + $0x8] sm:$0xff]
        %v353 = vld [vmem:[#allocation7 + $0x10] sm:$0xff]
        %v354 = vld [vmem:[#allocation7 + $0x18] sm:$0xff]
        %v355 = vld [vmem:[#allocation7 + $0x20] sm:$0xff]
        %v356 = vld [vmem:[#allocation7 + $0x28] sm:$0xff]
        %v357 = vld [vmem:[#allocation7 + $0x30] sm:$0xff]
        %v358 = vld [vmem:[#allocation7 + $0x38] sm:$0xff]
        %v359 = vld [vmem:[#allocation7 + $0x40] sm:$0xff]
        %v360 = vld [vmem:[#allocation7 + $0x48] sm:$0xff]
        %v361 = vld [vmem:[#allocation7 + $0x50] sm:$0xff]
        %v362 = vld [vmem:[#allocation7 + $0x58] sm:$0xff]
        %v363 = vld [vmem:[#allocation7 + $0x60] sm:$0xff]
        %v364 = vld [vmem:[#allocation7 + $0x68] sm:$0xff]
        %v365 = vld [vmem:[#allocation7 + $0x70] sm:$0xff]
        %v366 = vld [vmem:[#allocation7 + $0x78] sm:$0xff]
        %v367 = vld [vmem:[%s4] sm:$0x1]
        %v369 = vlaneseq
        %v370 = vshrl.u32 %v369, 7
        %v371 = vsub.s32 0, %v370
        %v372 = vrot.slane %v367, %v371
        %374 = vmatprep.subr.mxu0 0.0
        %375 = vmatpush1.msra.mxu0 %v351
        %376 = vmatprep.subr.mxu0 0.0
        %377 = vmatpush1.msra.mxu0 %v352
        %378 = vmatprep.subr.mxu0 0.0
        %379 = vmatpush1.msra.mxu0 %v353
        %380 = vmatprep.subr.mxu0 0.0
        %381 = vmatpush1.msra.mxu0 %v354
        %382 = vmatprep.subr.mxu0 0.0
        %383 = vmatpush1.msra.mxu0 %v355
        %384 = vmatprep.subr.mxu0 0.0
        %385 = vmatpush1.msra.mxu0 %v356
        %386 = vmatprep.subr.mxu0 0.0
        %387 = vmatpush1.msra.mxu0 %v357
        %388 = vmatprep.subr.mxu0 0.0
        %389 = vmatpush1.msra.mxu0 %v358
        %390 = vmatprep.subr.mxu0 0.0
        %391 = vmatpush1.msra.mxu0 %v359
        %392 = vmatprep.subr.mxu0 0.0
        %393 = vmatpush1.msra.mxu0 %v360
        %394 = vmatprep.subr.mxu0 0.0
        %395 = vmatpush1.msra.mxu0 %v361
        %396 = vmatprep.subr.mxu0 0.0
        %397 = vmatpush1.msra.mxu0 %v362
        %398 = vmatprep.subr.mxu0 0.0
        %399 = vmatpush1.msra.mxu0 %v363
        %400 = vmatprep.subr.mxu0 0.0
        %401 = vmatpush1.msra.mxu0 %v364
        %402 = vmatprep.subr.mxu0 0.0
        %403 = vmatpush1.msra.mxu0 %v365
        %404 = vmatprep.subr.mxu0 0.0
        %405 = vmatpush1.msra.mxu0 %v366
        %406 = vmatprep.subr.mxu0 0.0
        %407 = vmatpush1.msra.mxu0 0.0
        %408 = vmatprep.subr.mxu0 0.0
        %409 = vmatpush1.msra.mxu0 0.0
        %410 = vmatprep.subr.mxu0 0.0
        %411 = vmatpush1.msra.mxu0 0.0
        %412 = vmatprep.subr.mxu0 0.0
        %413 = vmatpush1.msra.mxu0 0.0
        %414 = vmatprep.subr.mxu0 0.0
        %415 = vmatpush1.msra.mxu0 0.0
        %416 = vmatprep.subr.mxu0 0.0
        %417 = vmatpush1.msra.mxu0 0.0
        %418 = vmatprep.subr.mxu0 0.0
        %419 = vmatpush1.msra.mxu0 0.0
        %420 = vmatprep.subr.mxu0 0.0
        %421 = vmatpush1.msra.mxu0 0.0
        %422 = vmatprep.subr.mxu0 0.0
        %423 = vmatpush1.msra.mxu0 0.0
        %424 = vmatprep.subr.mxu0 0.0
        %425 = vmatpush1.msra.mxu0 0.0
        %426 = vmatprep.subr.mxu0 0.0
        %427 = vmatpush1.msra.mxu0 0.0
        %428 = vmatprep.subr.mxu0 0.0
        %429 = vmatpush1.msra.mxu0 0.0
        %430 = vmatprep.subr.mxu0 0.0
        %431 = vmatpush1.msra.mxu0 0.0
        %432 = vmatprep.subr.mxu0 0.0
        %433 = vmatpush1.msra.mxu0 0.0
        %434 = vmatprep.subr.mxu0 0.0
        %435 = vmatpush1.msra.mxu0 0.0
        %436 = vmatprep.subr.mxu0 0.0
        %437 = vmatpush1.msra.mxu0 0.0
        %438 = vmatprep.mubr.f32.mxu0 0.0
        %439 = vmatmul.mubr.f32.gmra.mrb[0].mxu0 %v348
        %v440 = vpop.f32.mrb[0].mxu0
        %v441 = vadd.f32 %v372, %v440
        %v442 = vpop.f32.mrb[0].mxu0
        %443 = vdwg.mxu0
        %444 = vmax.xlane.f32.xlu0 %v441
        %v445 = vpop.xlane.xlu0 %444
        %v446 = vsub.f32 %v441, %v445
        %v447 = vmul.f32 %v446, 1.442695
        %v448 = vpow.pop %v447
        %449 = vadd.xlane.f32.xlu0 %v448
        %v450 = vpop.xlane.xlu0 %449
        %v451 = vrcp.pop %v450
        %v452 = vmul.f32 %v448, %v451
        %v453 = vld [vmem:[#allocation8] sm:$0xff]
        %v454 = vld [vmem:[#allocation8 + $0x8] sm:$0xff]
        %v455 = vld [vmem:[#allocation8 + $0x10] sm:$0xff]
        %v456 = vld [vmem:[#allocation8 + $0x18] sm:$0xff]
        %457 = vxpose.xlu0.b32.start [1/16] %v265, 128
        %458 = vxpose.xlu0.b32.cont [2/16] 0.0, 128
        %459 = vxpose.xlu0.b32.cont [3/16] 0.0, 128
        %460 = vxpose.xlu0.b32.cont [4/16] 0.0, 128
        %461 = vxpose.xlu0.b32.cont [5/16] 0.0, 128
        %462 = vxpose.xlu0.b32.cont [6/16] 0.0, 128
        %463 = vxpose.xlu0.b32.cont [7/16] 0.0, 128
        %464 = vxpose.xlu0.b32.cont [8/16] 0.0, 128
        %465 = vxpose.xlu0.b32.cont [9/16] 0.0, 128
        %466 = vxpose.xlu0.b32.cont [10/16] 0.0, 128
        %467 = vxpose.xlu0.b32.cont [11/16] 0.0, 128
        %468 = vxpose.xlu0.b32.cont [12/16] 0.0, 128
        %469 = vxpose.xlu0.b32.cont [13/16] 0.0, 128
        %470 = vxpose.xlu0.b32.cont [14/16] 0.0, 128
        %471 = vxpose.xlu0.b32.cont [15/16] 0.0, 128
        %472 = vxpose.xlu0.b32.end [16/16] 0.0, 128
        %v473 = vpop.trf.xlu0
        %v474 = vpop.trf.xlu0
        %v475 = vpop.trf.xlu0
        %v476 = vpop.trf.xlu0
        %v477 = vpop.trf.xlu0
        %v478 = vpop.trf.xlu0
        %v479 = vpop.trf.xlu0
        %v480 = vpop.trf.xlu0
        %v481 = vpop.trf.xlu0
        %v482 = vpop.trf.xlu0
        %v483 = vpop.trf.xlu0
        %v484 = vpop.trf.xlu0
        %v485 = vpop.trf.xlu0
        %v486 = vpop.trf.xlu0
        %v487 = vpop.trf.xlu0
        %v488 = vpop.trf.xlu0
        %vm489 = vcmask 64512
        %v491 = vsel %vm489, %v473, 0
        %v494 = vsel %vm489, %v474, 0
        %v497 = vsel %vm489, %v475, 0
        %v500 = vsel %vm489, %v476, 0
        %502 = vmatprep.subr.mxu0 0.0
        %503 = vmatpush1.msra.mxu0 %v452
        %504 = vmatprep.subr.mxu0 0.0
        %505 = vmatpush1.msra.mxu0 0.0
        %506 = vmatprep.subr.mxu0 0.0
        %507 = vmatpush1.msra.mxu0 0.0
        %508 = vmatprep.subr.mxu0 0.0
        %509 = vmatpush1.msra.mxu0 0.0
        %510 = vmatprep.subr.mxu0 0.0
        %511 = vmatpush1.msra.mxu0 0.0
        %512 = vmatprep.subr.mxu0 0.0
        %513 = vmatpush1.msra.mxu0 0.0
        %514 = vmatprep.subr.mxu0 0.0
        %515 = vmatpush1.msra.mxu0 0.0
        %516 = vmatprep.subr.mxu0 0.0
        %517 = vmatpush1.msra.mxu0 0.0
        %518 = vmatprep.subr.mxu0 0.0
        %519 = vmatpush1.msra.mxu0 0.0
        %520 = vmatprep.subr.mxu0 0.0
        %521 = vmatpush1.msra.mxu0 0.0
        %522 = vmatprep.subr.mxu0 0.0
        %523 = vmatpush1.msra.mxu0 0.0
        %524 = vmatprep.subr.mxu0 0.0
        %525 = vmatpush1.msra.mxu0 0.0
        %526 = vmatprep.subr.mxu0 0.0
        %527 = vmatpush1.msra.mxu0 0.0
        %528 = vmatprep.subr.mxu0 0.0
        %529 = vmatpush1.msra.mxu0 0.0
        %530 = vmatprep.subr.mxu0 0.0
        %531 = vmatpush1.msra.mxu0 0.0
        %532 = vmatprep.subr.mxu0 0.0
        %533 = vmatpush1.msra.mxu0 0.0
        %534 = vmatprep.subr.mxu0 0.0
        %535 = vmatpush1.msra.mxu0 0.0
        %536 = vmatprep.subr.mxu0 0.0
        %537 = vmatpush1.msra.mxu0 0.0
        %538 = vmatprep.subr.mxu0 0.0
        %539 = vmatpush1.msra.mxu0 0.0
        %540 = vmatprep.subr.mxu0 0.0
        %541 = vmatpush1.msra.mxu0 0.0
        %542 = vmatprep.subr.mxu0 0.0
        %543 = vmatpush1.msra.mxu0 0.0
        %544 = vmatprep.subr.mxu0 0.0
        %545 = vmatpush1.msra.mxu0 0.0
        %546 = vmatprep.subr.mxu0 0.0
        %547 = vmatpush1.msra.mxu0 0.0
        %548 = vmatprep.subr.mxu0 0.0
        %549 = vmatpush1.msra.mxu0 0.0
        %550 = vmatprep.subr.mxu0 0.0
        %551 = vmatpush1.msra.mxu0 0.0
        %552 = vmatprep.subr.mxu0 0.0
        %553 = vmatpush1.msra.mxu0 0.0
        %554 = vmatprep.subr.mxu0 0.0
        %555 = vmatpush1.msra.mxu0 0.0
        %556 = vmatprep.subr.mxu0 0.0
        %557 = vmatpush1.msra.mxu0 0.0
        %558 = vmatprep.subr.mxu0 0.0
        %559 = vmatpush1.msra.mxu0 0.0
        %560 = vmatprep.subr.mxu0 0.0
        %561 = vmatpush1.msra.mxu0 0.0
        %562 = vmatprep.subr.mxu0 0.0
        %563 = vmatpush1.msra.mxu0 0.0
        %564 = vmatprep.subr.mxu0 0.0
        %565 = vmatpush1.msra.mxu0 0.0
        %566 = vmatprep.mubr.f32.mxu0 0.0
        %567 = vmatmul.mubr.f32.gmra.mrb[0].mxu0 %v491
        %v568 = vpop.f32.mrb[0].mxu0
        %v569 = vadd.f32 0.0, %v568
        %v570 = vpop.f32.mrb[0].mxu0
        %571 = vmatprep.mubr.f32.mxu0 0.0
        %572 = vmatmul.mubr.f32.gmra.mrb[0].mxu0 %v494
        %v573 = vpop.f32.mrb[0].mxu0
        %v574 = vadd.f32 0.0, %v573
        %v575 = vpop.f32.mrb[0].mxu0
        %576 = vmatprep.mubr.f32.mxu0 0.0
        %577 = vmatmul.mubr.f32.gmra.mrb[0].mxu0 %v497
        %v578 = vpop.f32.mrb[0].mxu0
        %v579 = vadd.f32 0.0, %v578
        %v580 = vpop.f32.mrb[0].mxu0
        %581 = vmatprep.mubr.f32.mxu0 0.0
        %582 = vmatmul.mubr.f32.gmra.mrb[0].mxu0 %v500
        %v583 = vpop.f32.mrb[0].mxu0
        %v584 = vadd.f32 0.0, %v583
        %v585 = vpop.f32.mrb[0].mxu0
        %586 = vdwg.mxu0
        %v587 = vadd.f32 %v453, %v569
        %v588 = vadd.f32 %v454, %v574
        %v589 = vadd.f32 %v455, %v579
        %v590 = vadd.f32 %v456, %v584
        %591 = vst [vmem:[#allocation8] sm:$0xff] %v587
        %592 = vst [vmem:[#allocation8 + $0x8] sm:$0xff] %v588
        %593 = vst [vmem:[#allocation8 + $0x10] sm:$0xff] %v589
        %594 = vst [vmem:[#allocation8 + $0x18] sm:$0xff] %v590
        // Predicated region
        $region57: #{tpu_custom_call.1} parent=39 // pred_check
          %p595 = pneg %p144
        $region58: #{tpu_custom_call.1} parent=39 // pred_check_branch
          %597 = sbr.rel (%p595) target = $region60
        $region59: #{tpu_custom_call.1} parent=39 // pred_region
          %s599 = ssub.s32 512, 512
          %600 = vsyncadd [#allocation4], %s599
          %s601 = sshll.u32 [#allocation8], 4
          %s602 = int_to_ptr.vmem [resolvable:$true] %s601
          %607 = dma.vmem_to_hbm [thread:$0]  %s602, 512, %s5, [#allocation4], 128, 128, 8
        $region60: #{tpu_custom_call.1} parent=39 // pred_fallthru
          _
        // Predicated region
        $region61: #{tpu_custom_call.1} parent=39 // pred_check
          %p608 = pneg %p144
        $region62: #{tpu_custom_call.1} parent=39 // pred_check_branch
          %610 = sbr.rel (%p608) target = $region64
        $region63: #{tpu_custom_call.1} parent=39 // pred_region
          %611 = dma.done [#allocation4], 512
        $region64: #{tpu_custom_call.1} parent=39 // pred_fallthru
          _
      $region40: #{tpu_custom_call.1} parent=5 // pred_fallthru
        _
      %p612 = scmp.le.s32.totalorder 2, %s16
      // Predicated region
      $region65: #{tpu_custom_call.1} parent=5 // pred_check
        %p613 = pneg %p612
      $region66: #{tpu_custom_call.1} parent=5 // pred_check_branch
        %615 = sbr.rel (%p613) target = $region68
      $region67: #{tpu_custom_call.1} parent=5 // pred_region
        %s616 = ssub.s32 %s16, 2
      $region68: #{tpu_custom_call.1} parent=5 // pred_fallthru
        _
    $region6: #{tpu_custom_call.1} parent=1 // loop_footer
      %s20 = sadd.s32 1, %s16
    $region7: #{tpu_custom_call.1} parent=1 // loop_footer_branch
      %15 = sbr.rel target = $region3
    $region8: #{tpu_custom_call.1} parent=1 // loop_exit
      _
    %617 = vsyncpa [#allocation3], 1
    %s618 = scalar_lea.sflag [#allocation3], 1
    %619 = vsyncpa %s618, 1
    %620 = vsyncpa [#allocation6], 1
    %621 = vsyncpa [#allocation4], 1
    %s622 = scalar_lea.sflag [#allocation4], 1
    %623 = vsyncpa %s622, 1

</llo_original>
